<compile_context>
chip_gen: v6e
topology: v6e:2x2x1
jax: 0.10.0
libtpu: 0.0.40
codegen_flags: <defaults>
</compile_context>

<pallas_src>
import math
import functools

import jax
import jax.numpy as jnp
from jax.experimental import pallas as pl
from jax.experimental.pallas import tpu as pltpu

# --- module constants (match the PyTorch __init__ defaults) -----------------
_M_ARG = 0.5                      # `m` argument of __init__ (used for cos_m/sin_m/th/mm)
SELF_M = 0.4                      # self.m (used for the batched sample_angles path)
S_SCALE = 1.0                     # self.s = 1 (hard-coded in the module)
COS_M = math.cos(_M_ARG)
SIN_M = math.sin(_M_ARG)
TH = math.cos(math.pi - _M_ARG)
MM = math.sin(math.pi - _M_ARG) * _M_ARG

MAX_TILE_B = 256                  # multiple of 8 (sublanes)
MAX_TILE_C = 2048                 # multiple of 128 (lanes); big tile amortizes per-step overhead


def _round_up(x, m):
    return (x + m - 1) // m * m


def _make_kernel(tile_c, easy_margin, s):
    def kernel(cos_ref, label_ref, cosm_ref, sinm_ref, th_ref, mm_ref, out_ref):
        cosine = cos_ref[...]                                   # (TB, TC) f32
        cos_m = cosm_ref[...]                                   # (TB, 1)  f32
        sin_m = sinm_ref[...]                                   # (TB, 1)  f32
        labels = label_ref[...]                                 # (TB, 1)  i32

        one = jnp.float32(1.0)
        sine = jnp.sqrt(jnp.clip(one - cosine * cosine,
                                 jnp.float32(1e-6), jnp.float32(1.0 - 1e-6)))
        phi = cosine * cos_m - sine * sin_m
        if easy_margin:
            phi = jnp.where(cosine > 0.0, phi, cosine)
        else:
            phi = jnp.where(cosine > th_ref[...], phi, cosine - mm_ref[...])

        # one-hot over the class (lane) axis, offset by this C-tile's origin.
        col0 = pl.program_id(1) * tile_c
        cols = jax.lax.broadcasted_iota(jnp.int32, cosine.shape, 1) + col0
        one_hot = cols == labels                                # (TB, TC) bool

        out = jnp.where(one_hot, phi, cosine)
        if s != 1.0:
            out = out * jnp.float32(s)
        out_ref[...] = out

    return kernel


@functools.partial(jax.jit, static_argnames=("easy_margin", "has_angles"))
def _arc_margin_pallas(cosine, label, cos_m, sin_m, th, mm, easy_margin, has_angles):
    del has_angles  # only used to split the jit cache between the two paths
    B, C = cosine.shape

    tb = min(MAX_TILE_B, _round_up(B, 8))
    tc = min(MAX_TILE_C, _round_up(C, 128))
    Bp = _round_up(B, tb)
    Cp = _round_up(C, tc)

    cos_p = jnp.pad(cosine, ((0, Bp - B), (0, Cp - C)))
    lab_p = jnp.pad(label.astype(jnp.int32).reshape(B, 1), ((0, Bp - B), (0, 0)))

    def pad_b(a):
        return jnp.pad(a, ((0, Bp - B), (0, 0)))

    row_spec = pl.BlockSpec((tb, 1), lambda i, j: (i, 0))
    tile_spec = pl.BlockSpec((tb, tc), lambda i, j: (i, j))

    out = pl.pallas_call(
        _make_kernel(tc, easy_margin, S_SCALE),
        out_shape=jax.ShapeDtypeStruct((Bp, Cp), jnp.float32),
        grid=(Bp // tb, Cp // tc),
        in_specs=[
            tile_spec,   # cosine tile
            row_spec,    # label
            row_spec,    # cos_m
            row_spec,    # sin_m
            row_spec,    # th
            row_spec,    # mm
        ],
        out_specs=tile_spec,
        compiler_params=pltpu.CompilerParams(
            dimension_semantics=("parallel", "parallel"),
            vmem_limit_bytes=32 * 1024 * 1024,
        ),
    )(cos_p, lab_p, pad_b(cos_m), pad_b(sin_m), pad_b(th), pad_b(mm))

    return out[:B, :C]


def arc_margin_product(cosine, label, sample_angles=None, easy_margin=False):
    """Faithful forward of ArcMarginProduct (s=1, m=0.4, margin constants from m=0.5)."""
    if label is None:
        return cosine
    cosine = cosine.astype(jnp.float32)
    B, _ = cosine.shape

    if sample_angles is None:
        cos_m = jnp.full((B, 1), COS_M, jnp.float32)
        sin_m = jnp.full((B, 1), SIN_M, jnp.float32)
        th = jnp.full((B, 1), TH, jnp.float32)
        mm = jnp.full((B, 1), MM, jnp.float32)
        has_angles = False
    else:
        bm = (SELF_M + sample_angles.astype(jnp.float32)).reshape(B, 1)
        cos_m = jnp.cos(bm)
        sin_m = jnp.sin(bm)
        th = jnp.cos(math.pi - bm)
        mm = jnp.sin(math.pi - bm) * bm
        has_angles = True

    return _arc_margin_pallas(cosine, label, cos_m, sin_m, th, mm,
                              easy_margin, has_angles)


def arc_margin_reference(cosine, label, sample_angles=None, easy_margin=False):
    """Pure-JAX mirror of the PyTorch forward, for verification."""
    if label is None:
        return cosine
    cosine = cosine.astype(jnp.float32)
    sine = jnp.sqrt(jnp.clip(1.0 - cosine ** 2, 1e-6, 1.0 - 1e-6))
    if sample_angles is None:
        phi = cosine * COS_M - sine * SIN_M
        if easy_margin:
            phi = jnp.where(cosine > 0.0, phi, cosine)
        else:
            phi = jnp.where(cosine > TH, phi, cosine - MM)
    else:
        bm = (SELF_M + sample_angles.astype(jnp.float32))[:, None]
        cos_m = jnp.cos(bm)
        sin_m = jnp.sin(bm)
        th = jnp.cos(math.pi - bm)
        mm = jnp.sin(math.pi - bm) * bm
        phi = cosine * cos_m - sine * sin_m
        if easy_margin:
            phi = jnp.where(cosine > 0.0, phi, cosine)
        else:
            phi = jnp.where(cosine > th, phi, cosine - mm)
    one_hot = jax.nn.one_hot(label, cosine.shape[1], dtype=jnp.float32)
    return (one_hot * phi + (1.0 - one_hot) * cosine) * S_SCALE


if __name__ == "__main__":
    B, C = 8, 16

    key = jax.random.PRNGKey(0)
    k_cos, k_lab, k_ang = jax.random.split(key, 3)

    # cosine-similarity logits in [-1, 1]
    cosine = jax.random.uniform(k_cos, (B, C), dtype=jnp.float32,
                                minval=-1.0, maxval=1.0)
    label = jax.random.randint(k_lab, (B,), 0, C, dtype=jnp.int32)
    sample_angles = jax.random.uniform(k_ang, (B,), dtype=jnp.float32,
                                       minval=0.0, maxval=0.3)

    # Path 1: sample_angles=None (fixed margin constants)
    out1 = jax.block_until_ready(arc_margin_product(cosine, label))
    ref1 = arc_margin_reference(cosine, label)
    assert out1.shape == (B, C)
    assert jnp.allclose(out1, ref1, rtol=1e-5, atol=1e-5), \
        f"fixed-margin max abs err {jnp.max(jnp.abs(out1 - ref1))}"

    # Path 2: batched per-sample margins
    out2 = jax.block_until_ready(arc_margin_product(cosine, label, sample_angles))
    ref2 = arc_margin_reference(cosine, label, sample_angles)
    assert jnp.allclose(out2, ref2, rtol=1e-5, atol=1e-5), \
        f"batched-margin max abs err {jnp.max(jnp.abs(out2 - ref2))}"

    # label=None path is a trivial passthrough handled in the wrapper.
    out3 = arc_margin_product(cosine, None)
    assert jnp.allclose(out3, cosine)

    print("KERNEL_OK")
</pallas_src>

<mosaic_0001>
module attributes {stable_mosaic.version = 11 : i64} {
  func.func @kernel(%arg0: i32, %arg1: i32, %arg2: memref<8x128xf32, #tpu.memory_space<vmem>>, %arg3: memref<8x1xi32, #tpu.memory_space<vmem>>, %arg4: memref<8x1xf32, #tpu.memory_space<vmem>>, %arg5: memref<8x1xf32, #tpu.memory_space<vmem>>, %arg6: memref<8x1xf32, #tpu.memory_space<vmem>>, %arg7: memref<8x1xf32, #tpu.memory_space<vmem>>, %arg8: memref<8x128xf32, #tpu.memory_space<vmem>>) attributes {dimension_semantics = [#tpu.dimension_semantics<parallel>, #tpu.dimension_semantics<parallel>], iteration_bounds = array<i64: 1, 1>, scalar_prefetch = 0 : i64, scratch_operands = 0 : i64, tpu.core_type = #tpu.core_type<tc>, window_params = [{transform_indices = @transform_0, window_bounds = array<i64: 8, 128>}, {transform_indices = @transform_1, window_bounds = array<i64: 8, 1>}, {transform_indices = @transform_2, window_bounds = array<i64: 8, 1>}, {transform_indices = @transform_3, window_bounds = array<i64: 8, 1>}, {transform_indices = @transform_4, window_bounds = array<i64: 8, 1>}, {transform_indices = @transform_5, window_bounds = array<i64: 8, 1>}, {transform_indices = @transform_6, window_bounds = array<i64: 8, 128>}]} {
    %c0 = arith.constant 0 : index
    %c0_0 = arith.constant 0 : index
    %0 = vector.load %arg2[%c0, %c0_0] : memref<8x128xf32, #tpu.memory_space<vmem>>, vector<8x128xf32>
    %c0_1 = arith.constant 0 : index
    %c0_2 = arith.constant 0 : index
    %1 = vector.load %arg4[%c0_1, %c0_2] : memref<8x1xf32, #tpu.memory_space<vmem>>, vector<8x1xf32>
    %c0_3 = arith.constant 0 : index
    %c0_4 = arith.constant 0 : index
    %2 = vector.load %arg5[%c0_3, %c0_4] : memref<8x1xf32, #tpu.memory_space<vmem>>, vector<8x1xf32>
    %c0_5 = arith.constant 0 : index
    %c0_6 = arith.constant 0 : index
    %3 = vector.load %arg3[%c0_5, %c0_6] : memref<8x1xi32, #tpu.memory_space<vmem>>, vector<8x1xi32>
    %4 = arith.mulf %0, %0 : vector<8x128xf32>
    %cst = arith.constant 1.000000e+00 : f32
    %5 = vector.broadcast %cst : f32 to vector<8x128xf32>
    %6 = arith.subf %5, %4 : vector<8x128xf32>
    %cst_7 = arith.constant 9.99999997E-7 : f32
    %cst_8 = arith.constant 0.999998986 : f32
    %7 = vector.broadcast %cst_7 : f32 to vector<8x128xf32>
    %8 = arith.maximumf %7, %6 : vector<8x128xf32>
    %9 = vector.broadcast %cst_8 : f32 to vector<8x128xf32>
    %10 = arith.minimumf %9, %8 : vector<8x128xf32>
    %11 = math.sqrt %10 : vector<8x128xf32>
    %12 = vector.broadcast %1 : vector<8x1xf32> to vector<8x128xf32>
    %13 = arith.mulf %0, %12 : vector<8x128xf32>
    %14 = vector.broadcast %2 : vector<8x1xf32> to vector<8x128xf32>
    %15 = arith.mulf %11, %14 : vector<8x128xf32>
    %16 = arith.subf %13, %15 : vector<8x128xf32>
    %c0_9 = arith.constant 0 : index
    %c0_10 = arith.constant 0 : index
    %17 = vector.load %arg6[%c0_9, %c0_10] : memref<8x1xf32, #tpu.memory_space<vmem>>, vector<8x1xf32>
    %18 = vector.broadcast %17 : vector<8x1xf32> to vector<8x128xf32>
    %19 = arith.cmpf ogt, %0, %18 : vector<8x128xf32>
    %c0_11 = arith.constant 0 : index
    %c0_12 = arith.constant 0 : index
    %20 = vector.load %arg7[%c0_11, %c0_12] : memref<8x1xf32, #tpu.memory_space<vmem>>, vector<8x1xf32>
    %21 = vector.broadcast %20 : vector<8x1xf32> to vector<8x128xf32>
    %22 = arith.subf %0, %21 : vector<8x128xf32>
    %23 = arith.select %19, %16, %22 : vector<8x128xi1>, vector<8x128xf32>
    %c128_i32 = arith.constant 128 : i32
    %24 = arith.muli %arg1, %c128_i32 : i32
    %25 = tpu.iota {dimensions = array<i32: 1>} : vector<8x128xi32>
    %26 = vector.broadcast %24 : i32 to vector<8x128xi32>
    %27 = arith.addi %25, %26 : vector<8x128xi32>
    %28 = vector.broadcast %3 : vector<8x1xi32> to vector<8x128xi32>
    %29 = arith.cmpi eq, %27, %28 : vector<8x128xi32>
    %30 = arith.select %29, %23, %0 : vector<8x128xi1>, vector<8x128xf32>
    %c0_13 = arith.constant 0 : index
    %c0_14 = arith.constant 0 : index
    %31 = vector.load %arg8[%c0_13, %c0_14] : memref<8x128xf32, #tpu.memory_space<vmem>>, vector<8x128xf32>
    tpu.vector_store %arg8[%c0_13, %c0_14], %30 {strides = array<i32>} : memref<8x128xf32, #tpu.memory_space<vmem>>, vector<8x128xf32>,
    return
  }
  func.func @transform_0(%arg0: i32, %arg1: i32) -> (i32, i32) {
    %c0_i32 = arith.constant 0 : i32
    return %arg0, %arg1 : i32, i32
  }
  func.func @transform_1(%arg0: i32, %arg1: i32) -> (i32, i32) {
    %c0_i32 = arith.constant 0 : i32
    %c0_i32_0 = arith.constant 0 : i32
    return %arg0, %c0_i32 : i32, i32
  }
  func.func @transform_2(%arg0: i32, %arg1: i32) -> (i32, i32) {
    %c0_i32 = arith.constant 0 : i32
    %c0_i32_0 = arith.constant 0 : i32
    return %arg0, %c0_i32 : i32, i32
  }
  func.func @transform_3(%arg0: i32, %arg1: i32) -> (i32, i32) {
    %c0_i32 = arith.constant 0 : i32
    %c0_i32_0 = arith.constant 0 : i32
    return %arg0, %c0_i32 : i32, i32
  }
  func.func @transform_4(%arg0: i32, %arg1: i32) -> (i32, i32) {
    %c0_i32 = arith.constant 0 : i32
    %c0_i32_0 = arith.constant 0 : i32
    return %arg0, %c0_i32 : i32, i32
  }
  func.func @transform_5(%arg0: i32, %arg1: i32) -> (i32, i32) {
    %c0_i32 = arith.constant 0 : i32
    %c0_i32_0 = arith.constant 0 : i32
    return %arg0, %c0_i32 : i32, i32
  }
  func.func @transform_6(%arg0: i32, %arg1: i32) -> (i32, i32) {
    %c0_i32 = arith.constant 0 : i32
    return %arg0, %arg1 : i32, i32
  }
}

</mosaic_0001>

<llo_original>
// kernel: _arc_margin_pallas.1
$region0: #{_arc_margin_pallas.1}
  #allocation0 [shape = 'u32[]', space=smem, size = 0x4, offset = 0x4, fixed_abs, tag = 'smem constant byte address 0x4 - core index']
  #allocation1 [shape = 'u32[144,128]{1,0:T(1,128)}', space=vmem, size = 0x12000, scoped, tag = 'internal scratch']
  %s0 = inlined_call_operand.vmem [shape: f32[8,128], index: 0, kind: input, shape index: {}]
  %s1 = inlined_call_operand.vmem [shape: s32[8,1], index: 1, kind: input, shape index: {}]
  %s2 = inlined_call_operand.vmem [shape: f32[8,1], index: 2, kind: input, shape index: {}]
  %s3 = inlined_call_operand.vmem [shape: f32[8,1], index: 3, kind: input, shape index: {}]
  %s4 = inlined_call_operand.vmem [shape: f32[8,1], index: 4, kind: input, shape index: {}]
  %s5 = inlined_call_operand.vmem [shape: f32[8,1], index: 5, kind: input, shape index: {}]
  %s6 = inlined_call_operand.hbm [shape: f32[8,128], index: 6, kind: output, shape index: {}]
  %s7 = sld [smem:[#allocation0]]
  $region34: #{_arc_margin_pallas.1} parent=0
    _
  %s9 = ssub.s32 1, %s7
  %s10 = scalar_select 0, %s9, %s7
  $region1: #{_arc_margin_pallas.1} parent=0
    #allocation2 [shape = 'u8[4096]{0}', space=vmem, size = 0x1000, scoped, tag = 'output window, operand 0, single buffered']
    #allocation3 [shape = 's32[1]{0}', space=sflag, size = 0x4, scoped, tag = 'scoped memory for _arc_margin_pallas.1']
    %11 = vsyncpa [#allocation3], 0
    // Predicated region
    $region2: #{_arc_margin_pallas.1} parent=1 // pred_check
      _
    $region3: #{_arc_margin_pallas.1} parent=1 // pred_check_branch
      %13 = sbr.rel (0) target = $region5
    $region4: #{_arc_margin_pallas.1} parent=1 // pred_region
      _
    $region5: #{_arc_margin_pallas.1} parent=1 // pred_fallthru
      _
    // Predicated region
    $region6: #{_arc_margin_pallas.1} parent=1 // pred_check
      _
    $region7: #{_arc_margin_pallas.1} parent=1 // pred_check_branch
      %15 = sbr.rel (0) target = $region9
    $region8: #{_arc_margin_pallas.1} parent=1 // pred_region
      _
    $region9: #{_arc_margin_pallas.1} parent=1 // pred_fallthru
      _
    // Predicated region
    $region10: #{_arc_margin_pallas.1} parent=1 // pred_check
      _
    $region11: #{_arc_margin_pallas.1} parent=1 // pred_check_branch
      %17 = sbr.rel (0) target = $region13
    $region12: #{_arc_margin_pallas.1} parent=1 // pred_region
      _
    $region13: #{_arc_margin_pallas.1} parent=1 // pred_fallthru
      _
    // Predicated region
    $region14: #{_arc_margin_pallas.1} parent=1 // pred_check
      _
    $region15: #{_arc_margin_pallas.1} parent=1 // pred_check_branch
      %19 = sbr.rel (0) target = $region17
    $region16: #{_arc_margin_pallas.1} parent=1 // pred_region
      _
    $region17: #{_arc_margin_pallas.1} parent=1 // pred_fallthru
      _
    // Predicated region
    $region18: #{_arc_margin_pallas.1} parent=1 // pred_check
      _
    $region19: #{_arc_margin_pallas.1} parent=1 // pred_check_branch
      %21 = sbr.rel (0) target = $region21
    $region20: #{_arc_margin_pallas.1} parent=1 // pred_region
      _
    $region21: #{_arc_margin_pallas.1} parent=1 // pred_fallthru
      _
    // Predicated region
    $region22: #{_arc_margin_pallas.1} parent=1 // pred_check
      _
    $region23: #{_arc_margin_pallas.1} parent=1 // pred_check_branch
      %23 = sbr.rel (0) target = $region25
    $region24: #{_arc_margin_pallas.1} parent=1 // pred_region
      _
    $region25: #{_arc_margin_pallas.1} parent=1 // pred_fallthru
      _
    %v24 = vld [vmem:[%s0] sm:$0xff]
    %v25 = vld [vmem:[%s2] sm:$0xff]
    %v26 = vld [vmem:[%s3] sm:$0xff]
    %v27 = vld [vmem:[%s1] sm:$0xff]
    %v28 = vmul.f32 %v24, %v24
    %v29 = vsub.f32 1.0, %v28
    %v30 = vmax.f32 %v29, 1e-06
    %v31 = vmin.f32 %v30, 0.999999
    %v32 = vrsqrt.pop %v31
    %v33 = vmul.f32 %v31, %v32
    %vm34 = vcmp.eq.f32.partialorder %v31, inf
    %v35 = vsel %vm34, %v31, %v33
    %vm36 = vcmp.eq.f32.partialorder %v31, 0.0
    %v37 = vand.u32 %v31, 2147483648
    %v38 = vsel %vm36, %v37, %v35
    %40 = vset.pattern.permute.xlu0 0
    %41 = vperm.xlu0 %40, %v25
    %v42 = vpop.permute.xlu0 %41
    %v44 = vmul.f32 %v24, %v42
    %46 = vset.pattern.permute.xlu0 0
    %47 = vperm.xlu0 %46, %v26
    %v48 = vpop.permute.xlu0 %47
    %v50 = vmul.f32 %v38, %v48
    %v51 = vsub.f32 %v44, %v50
    %v52 = vld [vmem:[%s4] sm:$0xff]
    %54 = vset.pattern.permute.xlu0 0
    %55 = vperm.xlu0 %54, %v52
    %v56 = vpop.permute.xlu0 %55
    %vm58 = vcmp.gt.f32.partialorder %v24, %v56
    %v59 = vld [vmem:[%s5] sm:$0xff]
    %61 = vset.pattern.permute.xlu0 0
    %62 = vperm.xlu0 %61, %v59
    %v63 = vpop.permute.xlu0 %62
    %v65 = vsub.f32 %v24, %v63
    %v66 = vsel %vm58, %v51, %v65
    %s67 = smul.u32 0, 128
    %v68 = vlaneseq
    %v69 = vand.u32 %v68, 127
    %v70 = vstv %s67
    %v71 = vadd.s32 %v69, %v70
    %72 = vset.pattern.permute.xlu0 0
    %73 = vperm.xlu0 %72, %v27
    %v74 = vpop.permute.xlu0 %73
    %vm75 = vcmp.eq.s32.totalorder %v71, %v74
    %v76 = vsel %vm75, %v66, %v24
    %77 = vst [vmem:[#allocation2] sm:$0xff] %v76
    // Predicated region
    $region26: #{_arc_margin_pallas.1} parent=1 // pred_check
      _
    $region27: #{_arc_margin_pallas.1} parent=1 // pred_check_branch
      %79 = sbr.rel (0) target = $region29
    $region28: #{_arc_margin_pallas.1} parent=1 // pred_region
      %s81 = ssub.s32 128, 128
      %82 = vsyncadd [#allocation3], %s81
      %s84 = sshll.u32 [#allocation2], 4
      %s85 = int_to_ptr.vmem [resolvable:$true] %s84
      %87 = dma.vmem_to_hbm [thread:$0]  %s85, 128, %s6, [#allocation3]
    $region29: #{_arc_margin_pallas.1} parent=1 // pred_fallthru
      _
    // Predicated region
    $region30: #{_arc_margin_pallas.1} parent=1 // pred_check
      _
    $region31: #{_arc_margin_pallas.1} parent=1 // pred_check_branch
      %89 = sbr.rel (0) target = $region33
    $region32: #{_arc_margin_pallas.1} parent=1 // pred_region
      %90 = dma.done [#allocation3], 128
    $region33: #{_arc_margin_pallas.1} parent=1 // pred_fallthru
      _
    %91 = vsyncpa [#allocation3], 1

</llo_original>
